<compile_context>
chip_gen: v7x
topology: tpu7x:2x2x1
jax: 0.10.0
libtpu: 0.0.40
codegen_flags: <defaults>
</compile_context>

<pallas_src>
import functools

import jax
import jax.numpy as jnp
from jax import lax
from jax.experimental import pallas as pl
from jax.experimental.pallas import tpu as pltpu

MARGIN = 0.3
SCALE = 0.1
NUM_NUTRS = 4
EPS = 1e-12  # F.normalize eps


def _round_up(x, m):
    return ((x + m - 1) // m) * m


def _fused_multi_triplet_kernel(
        # scalar-prefetch refs (consumed by the index_maps, unused in body)
        src_idx_ref, tgt_idx_ref,
        # tensor inputs (embeddings are already L2-normalized by the wrapper)
        im_ref, rec_ref, nutrs_ref, nutrs_t_ref,
        # output (resident (1,1) accumulator block)
        out_ref,
        # scratch
        w_ref,
        *, margin, w_scale, batch, num_nutrs):
    del src_idx_ref, tgt_idx_ref
    p = pl.program_id(0)
    Bp = w_ref.shape[0]

    # --- one-time init: zero the accumulator and build the (masked, scaled)
    #     nutrient weight matrix. Folding the diag/padding mask and all the
    #     scalar factors in here removes the per-pair iota/compare/select
    #     chain and the per-pair divides from the body. ---
    @pl.when(p == 0)
    def _init():
        out_ref[...] = jnp.zeros_like(out_ref)
        w = jnp.zeros((Bp, Bp), jnp.float32)
        for k in range(num_nutrs):                 # static, init-only loop
            col_k = nutrs_ref[:, k:k + 1]          # (Bp, 1)
            row_k = nutrs_t_ref[k:k + 1, :]        # (1, Bp)
            w = w + jnp.abs(col_k - row_k)
        row_ids = lax.broadcasted_iota(jnp.int32, (Bp, Bp), 0)
        col_ids = lax.broadcasted_iota(jnp.int32, (Bp, Bp), 1)
        valid = row_ids != col_ids
        if batch < Bp:
            # Padded embedding rows are all-zero (hinge = margin > 0) but can
            # have a nonzero |nutrient| weight against real columns, so the
            # padding mask MUST be baked into w here.
            valid = valid & (row_ids < batch) & (col_ids < batch)
        # w_scale = scale / ((batch - 1) * num_pairs): folds the per-pair
        # 1/(B-1) and the final 1/num_pairs average into the weights.
        w_ref[...] = jnp.where(valid, w * w_scale, 0.0)

    im = im_ref[0]                                  # (Bp, Dp), matmul dtype
    rec = rec_ref[0]                                # (Bp, Dp)
    Dp = im.shape[1]

    # --- cosine similarity on the MXU (matmul_dtype inputs, f32 acc) ---
    sim = lax.dot_general(im, rec, (((1,), (1,)), ((), ())),
                          preferred_element_type=jnp.float32)      # (Bp, Bp)

    # --- positive-pair similarity sim[i, i], as a column and as a row,
    #     without materializing / masking a second (Bp, Bp) matrix ---
    prod = im * rec                                                 # (Bp, Dp)
    diag_col = jnp.sum(prod.astype(jnp.float32), axis=-1,
                       keepdims=True)                               # (Bp, 1)
    ones_mat = jnp.ones((8, Dp), prod.dtype)                        # matmul dtype
    diag_row = lax.dot_general(ones_mat, prod, (((1,), (1,)), ((), ())),
                               preferred_element_type=jnp.float32)[0:1, :]  # (1, Bp)

    # --- MarginRankingLoss(y=1): max(0, margin - dist + d)
    #     with dist = 1 - sim, d = 1 - diag  ==>  max(0, sim + margin - diag);
    #     `dist`, `d1`, `d2` are never formed. ---
    cost_im = jnp.maximum(sim + (margin - diag_col), 0.0)
    cost_rec = jnp.maximum(sim + (margin - diag_row), 0.0)

    total = jnp.sum((cost_im + cost_rec) * w_ref[...])
    out_ref[...] = out_ref[...] + total.reshape(1, 1)


def weighted_multi_triplet_loss(target_dict, nutrs, *, margin=MARGIN, scale=SCALE,
                                matmul_dtype=jnp.bfloat16):
    """Mirror of WeightedMultiTripletLoss.forward (including its
    iterate-while-removing key traversal), fused into one Pallas call.

    matmul_dtype=jnp.float32 is a check-only strict-precision path (f32 MXU is
    emulated multi-pass on all TPU generations and several x slower)."""
    key_order = list(target_dict.keys())

    # Replicate Python's `for src_key in keys: keys.remove(src_key)` semantics.
    keys = list(key_order)
    pairs, idx = [], 0
    while idx < len(keys):
        src_key = keys[idx]
        idx += 1
        keys.remove(src_key)
        if not len(keys):
            break
        pairs.extend((src_key, tgt_key) for tgt_key in keys)
    if not pairs:
        raise ValueError("WeightedMultiTripletLoss needs at least two keys")
    P = len(pairs)

    key_to_slot = {k: i for i, k in enumerate(key_order)}

    # Normalize each key exactly once here (pure-JAX glue); each key is reused
    # across several pairs so the kernel only ever sees normalized embeddings.
    def _normalize(x):
        x = jnp.asarray(x, jnp.float32)
        return x / jnp.maximum(jnp.linalg.norm(x, axis=-1, keepdims=True), EPS)

    emb = jnp.stack([_normalize(target_dict[k]) for k in key_order], axis=0)
    emb = emb.astype(matmul_dtype)          # bf16 storage halves per-pair DMA
    K, B, D = emb.shape
    assert B >= 2, "triplet loss needs batch >= 2"

    # Pad to lane/sublane-dense shapes (D -> mult of 128, B -> mult of 8).
    # Padded rows are exactly zero (post-normalization) and are masked out of
    # the loss via the weight matrix inside the kernel.
    Bp = _round_up(B, 8)
    Dp = _round_up(D, 128)
    if (Bp, Dp) != (B, D):
        emb = jnp.pad(emb, ((0, 0), (0, Bp - B), (0, Dp - D)))

    nutrs = jnp.asarray(nutrs, jnp.float32)
    num_nutrs = nutrs.shape[1]
    if Bp != B:
        nutrs = jnp.pad(nutrs, ((0, Bp - B), (0, 0)))
    nutrs_t = jnp.transpose(nutrs)                  # glue: (num_nutrs, Bp)

    src_idx = jnp.asarray([key_to_slot[s] for s, _ in pairs], jnp.int32)
    tgt_idx = jnp.asarray([key_to_slot[t] for _, t in pairs], jnp.int32)

    kernel = functools.partial(
        _fused_multi_triplet_kernel,
        margin=float(margin),
        w_scale=float(scale) / float((B - 1) * P),
        batch=B, num_nutrs=num_nutrs)

    # VMEM budget: double-buffered src/tgt blocks + f32 weight scratch +
    # generous allowance for live (Bp,Bp) f32 temporaries + nutrient blocks.
    emb_bytes = jnp.dtype(emb.dtype).itemsize
    vmem_need = (2 * 2 * Bp * Dp * emb_bytes
                 + Bp * Bp * 4
                 + 8 * Bp * Bp * 4
                 + 4 * Bp * num_nutrs * 4
                 + (2 << 20))
    try:
        vmem_cap = pltpu.get_tpu_info().vmem_capacity_bytes
    except Exception:
        vmem_cap = 64 * 1024 * 1024                 # v7x-safe fallback
    vmem_limit = int(max(min(vmem_need, 0.75 * vmem_cap), 16 * 1024 * 1024))

    out = pl.pallas_call(
        kernel,
        out_shape=jax.ShapeDtypeStruct((1, 1), jnp.float32),
        grid_spec=pltpu.PrefetchScalarGridSpec(
            num_scalar_prefetch=2,
            grid=(P,),
            in_specs=[
                # src / tgt embeddings picked out of the stacked (K, Bp, Dp)
                # tensor via the scalar-prefetched pair indices.
                pl.BlockSpec((1, Bp, Dp), lambda p, s, t: (s[p], 0, 0)),
                pl.BlockSpec((1, Bp, Dp), lambda p, s, t: (t[p], 0, 0)),
                # nutrient table (constant block -> fetched once, resident).
                pl.BlockSpec((Bp, num_nutrs), lambda p, s, t: (0, 0)),
                pl.BlockSpec((num_nutrs, Bp), lambda p, s, t: (0, 0)),
            ],
            out_specs=pl.BlockSpec((1, 1), lambda p, s, t: (0, 0)),
            scratch_shapes=[
                pltpu.VMEM((Bp, Bp), jnp.float32),   # masked+scaled weights
            ],
        ),
        compiler_params=pltpu.CompilerParams(
            # Pair axis accumulates into a single scalar -> must stay arbitrary.
            dimension_semantics=("arbitrary",),
            vmem_limit_bytes=vmem_limit,
        ),
    )(src_idx, tgt_idx, emb, emb, nutrs, nutrs_t)
    return out[0, 0]


# ------------------------- pure-JAX reference ----------------------------
def _ref_pair_loss(im, rec, weight, margin=MARGIN):
    im_n = im / jnp.maximum(jnp.linalg.norm(im, axis=-1, keepdims=True), EPS)
    rec_n = rec / jnp.maximum(jnp.linalg.norm(rec, axis=-1, keepdims=True), EPS)
    dist = 1.0 - im_n @ rec_n.T
    d = jnp.diag(dist)
    cost_im = jnp.maximum(margin - dist + d[:, None], 0.0)
    cost_rec = jnp.maximum(margin - dist + d[None, :], 0.0)
    eye = jnp.eye(im.shape[0], dtype=bool)
    cost_im = jnp.where(eye, 0.0, cost_im) * weight
    cost_rec = jnp.where(eye, 0.0, cost_rec) * weight
    return (cost_rec + cost_im).sum() / (im.shape[0] - 1)


def _ref_multi_loss(target_dict, nutrs):
    w = SCALE * jnp.sum(jnp.abs(nutrs[:, None, :] - nutrs[None, :, :]), axis=-1)
    keys = list(target_dict.keys())
    pairs, idx = [], 0
    while idx < len(keys):
        s = keys[idx]; idx += 1; keys.remove(s)
        if not keys:
            break
        pairs.extend((s, t) for t in keys)
    losses = sum(_ref_pair_loss(target_dict[s], target_dict[t], w) for s, t in pairs)
    return losses / len(pairs)


if __name__ == "__main__":
    B, D = 8, 32
    key = jax.random.PRNGKey(0)
    k1, k2, k3, k4 = jax.random.split(key, 4)
    target_dict = {
        "image": jax.random.normal(k1, (B, D), jnp.float32),
        "recipe": jax.random.normal(k2, (B, D), jnp.float32),
        "title": jax.random.normal(k3, (B, D), jnp.float32),
    }
    nutrs = jax.random.uniform(k4, (B, NUM_NUTRS), jnp.float32)

    # Strict-precision check path (f32 MXU inputs) and fast path (bf16 inputs).
    out_f32 = jax.block_until_ready(
        weighted_multi_triplet_loss(target_dict, nutrs, matmul_dtype=jnp.float32))
    out_bf16 = jax.block_until_ready(
        weighted_multi_triplet_loss(target_dict, nutrs))

    ref = _ref_multi_loss(dict(target_dict), nutrs)
    assert jnp.allclose(out_f32, ref, rtol=1e-4, atol=1e-4), (out_f32, ref)
    assert jnp.allclose(out_bf16, ref, rtol=2e-2, atol=2e-2), (out_bf16, ref)
    print("KERNEL_OK")
</pallas_src>

<mosaic_0001>
module attributes {stable_mosaic.version = 11 : i64} {
  func.func @_fused_multi_triplet_kernel(%arg0: i32, %arg1: memref<3xi32, #tpu.memory_space<smem>>, %arg2: memref<3xi32, #tpu.memory_space<smem>>, %arg3: memref<1x8x128xf32, #tpu.memory_space<vmem>>, %arg4: memref<1x8x128xf32, #tpu.memory_space<vmem>>, %arg5: memref<8x4xf32, #tpu.memory_space<vmem>>, %arg6: memref<4x8xf32, #tpu.memory_space<vmem>>, %arg7: memref<1x1xf32, #tpu.memory_space<vmem>>, %arg8: memref<8x8xf32, #tpu.memory_space<vmem>>) attributes {dimension_semantics = [#tpu.dimension_semantics<arbitrary>], iteration_bounds = array<i64: 3>, scalar_prefetch = 2 : i64, scratch_operands = 1 : i64, tpu.core_type = #tpu.core_type<tc>, window_params = [{transform_indices = @transform_0, window_bounds = array<i64: 1, 8, 128>}, {transform_indices = @transform_1, window_bounds = array<i64: 1, 8, 128>}, {pipeline_mode = #tpu.pipeline_mode<synchronous>, transform_indices = @transform_2, window_bounds = array<i64: 8, 4>}, {pipeline_mode = #tpu.pipeline_mode<synchronous>, transform_indices = @transform_3, window_bounds = array<i64: 4, 8>}, {pipeline_mode = #tpu.pipeline_mode<synchronous>, transform_indices = @transform_4, window_bounds = array<i64: 1, 1>}]} {
    %c0_i32 = arith.constant 0 : i32
    %0 = arith.cmpi eq, %arg0, %c0_i32 : i32
    %1 = arith.extui %0 : i1 to i32
    %c0_i32_0 = arith.constant 0 : i32
    %2 = arith.cmpi ne, %1, %c0_i32_0 : i32
    scf.if %2 {
      %cst_20 = arith.constant 0.000000e+00 : f32
      %37 = vector.broadcast %cst_20 : f32 to vector<1x1xf32>
      %c0_21 = arith.constant 0 : index
      %c0_22 = arith.constant 0 : index
      %38 = vector.load %arg7[%c0_21, %c0_22] : memref<1x1xf32, #tpu.memory_space<vmem>>, vector<1x1xf32>
      tpu.vector_store %arg7[%c0_21, %c0_22], %37 {strides = array<i32>} : memref<1x1xf32, #tpu.memory_space<vmem>>, vector<1x1xf32>,
      %cst_23 = arith.constant 0.000000e+00 : f32
      %39 = vector.broadcast %cst_23 : f32 to vector<8x8xf32>
      %c0_24 = arith.constant 0 : index
      %c0_25 = arith.constant 0 : index
      %40 = vector.load %arg5[%c0_24, %c0_25] : memref<8x4xf32, #tpu.memory_space<vmem>>, vector<8x1xf32>
      %c0_26 = arith.constant 0 : index
      %c0_27 = arith.constant 0 : index
      %41 = vector.load %arg6[%c0_26, %c0_27] : memref<4x8xf32, #tpu.memory_space<vmem>>, vector<1x8xf32>
      %42 = vector.broadcast %40 : vector<8x1xf32> to vector<8x8xf32>
      %43 = vector.broadcast %41 : vector<1x8xf32> to vector<8x8xf32>
      %44 = arith.subf %42, %43 : vector<8x8xf32>
      %45 = math.absf %44 : vector<8x8xf32>
      %46 = arith.addf %39, %45 : vector<8x8xf32>
      %c0_28 = arith.constant 0 : index
      %c1 = arith.constant 1 : index
      %47 = vector.load %arg5[%c0_28, %c1] : memref<8x4xf32, #tpu.memory_space<vmem>>, vector<8x1xf32>
      %c1_29 = arith.constant 1 : index
      %c0_30 = arith.constant 0 : index
      %48 = vector.load %arg6[%c1_29, %c0_30] : memref<4x8xf32, #tpu.memory_space<vmem>>, vector<1x8xf32>
      %49 = vector.broadcast %47 : vector<8x1xf32> to vector<8x8xf32>
      %50 = vector.broadcast %48 : vector<1x8xf32> to vector<8x8xf32>
      %51 = arith.subf %49, %50 : vector<8x8xf32>
      %52 = math.absf %51 : vector<8x8xf32>
      %53 = arith.addf %46, %52 : vector<8x8xf32>
      %c0_31 = arith.constant 0 : index
      %c2 = arith.constant 2 : index
      %54 = vector.load %arg5[%c0_31, %c2] : memref<8x4xf32, #tpu.memory_space<vmem>>, vector<8x1xf32>
      %c2_32 = arith.constant 2 : index
      %c0_33 = arith.constant 0 : index
      %55 = vector.load %arg6[%c2_32, %c0_33] : memref<4x8xf32, #tpu.memory_space<vmem>>, vector<1x8xf32>
      %56 = vector.broadcast %54 : vector<8x1xf32> to vector<8x8xf32>
      %57 = vector.broadcast %55 : vector<1x8xf32> to vector<8x8xf32>
      %58 = arith.subf %56, %57 : vector<8x8xf32>
      %59 = math.absf %58 : vector<8x8xf32>
      %60 = arith.addf %53, %59 : vector<8x8xf32>
      %c0_34 = arith.constant 0 : index
      %c3 = arith.constant 3 : index
      %61 = vector.load %arg5[%c0_34, %c3] : memref<8x4xf32, #tpu.memory_space<vmem>>, vector<8x1xf32>
      %c3_35 = arith.constant 3 : index
      %c0_36 = arith.constant 0 : index
      %62 = vector.load %arg6[%c3_35, %c0_36] : memref<4x8xf32, #tpu.memory_space<vmem>>, vector<1x8xf32>
      %63 = vector.broadcast %61 : vector<8x1xf32> to vector<8x8xf32>
      %64 = vector.broadcast %62 : vector<1x8xf32> to vector<8x8xf32>
      %65 = arith.subf %63, %64 : vector<8x8xf32>
      %66 = math.absf %65 : vector<8x8xf32>
      %67 = arith.addf %60, %66 : vector<8x8xf32>
      %68 = tpu.iota {dimensions = array<i32: 0>} : vector<8x8xi32>
      %69 = tpu.iota {dimensions = array<i32: 1>} : vector<8x8xi32>
      %70 = arith.cmpi ne, %68, %69 : vector<8x8xi32>
      %cst_37 = arith.constant 0.00476190494 : f32
      %71 = vector.broadcast %cst_37 : f32 to vector<8x8xf32>
      %72 = arith.mulf %67, %71 : vector<8x8xf32>
      %cst_38 = arith.constant 0.000000e+00 : f32
      %73 = vector.broadcast %cst_38 : f32 to vector<8x8xf32>
      %74 = arith.select %70, %72, %73 : vector<8x8xi1>, vector<8x8xf32>
      %c0_39 = arith.constant 0 : index
      %c0_40 = arith.constant 0 : index
      %75 = vector.load %arg8[%c0_39, %c0_40] : memref<8x8xf32, #tpu.memory_space<vmem>>, vector<8x8xf32>
      tpu.vector_store %arg8[%c0_39, %c0_40], %74 {strides = array<i32>} : memref<8x8xf32, #tpu.memory_space<vmem>>, vector<8x8xf32>,
    } else {
    }
    %c0 = arith.constant 0 : index
    %c0_1 = arith.constant 0 : index
    %c0_2 = arith.constant 0 : index
    %3 = vector.load %arg3[%c0, %c0_1, %c0_2] : memref<1x8x128xf32, #tpu.memory_space<vmem>>, vector<1x8x128xf32>
    %4 = vector.shape_cast %3 : vector<1x8x128xf32> to vector<8x128xf32>
    %c0_3 = arith.constant 0 : index
    %c0_4 = arith.constant 0 : index
    %c0_5 = arith.constant 0 : index
    %5 = vector.load %arg4[%c0_3, %c0_4, %c0_5] : memref<1x8x128xf32, #tpu.memory_space<vmem>>, vector<1x8x128xf32>
    %6 = vector.shape_cast %5 : vector<1x8x128xf32> to vector<8x128xf32>
    %cst = arith.constant dense<0.000000e+00> : vector<8x8xf32>
    %7 = tpu.matmul %4, %6, %cst {dimension_numbers = #tpu.dot_dimension_numbers<[1], [1], [0], [0], [0, 0, 1, 0], [], []>} : vector<8x128xf32>, vector<8x128xf32>, vector<8x8xf32> -> vector<8x8xf32>
    %8 = arith.mulf %4, %6 : vector<8x128xf32>
    %cst_6 = arith.constant dense<0.000000e+00> : vector<8xf32>
    %9 = vector.multi_reduction <add>, %8, %cst_6 [1] : vector<8x128xf32> to vector<8xf32>
    %10 = vector.shape_cast %9 : vector<8xf32> to vector<8x1xf32>
    %cst_7 = arith.constant 1.000000e+00 : f32
    %11 = vector.broadcast %cst_7 : f32 to vector<8x128xf32>
    %cst_8 = arith.constant dense<0.000000e+00> : vector<8x8xf32>
    %12 = tpu.matmul %11, %8, %cst_8 {dimension_numbers = #tpu.dot_dimension_numbers<[1], [1], [0], [0], [0, 0, 1, 0], [], []>} : vector<8x128xf32>, vector<8x128xf32>, vector<8x8xf32> -> vector<8x8xf32>
    %13 = vector.extract_strided_slice %12 {offsets = [0, 0], sizes = [1, 8], strides = [1, 1]} : vector<8x8xf32> to vector<1x8xf32>
    %cst_9 = arith.constant 3.000000e-01 : f32
    %14 = vector.broadcast %cst_9 : f32 to vector<8x1xf32>
    %15 = arith.subf %14, %10 : vector<8x1xf32>
    %16 = vector.broadcast %15 : vector<8x1xf32> to vector<8x8xf32>
    %17 = arith.addf %7, %16 : vector<8x8xf32>
    %cst_10 = arith.constant 0.000000e+00 : f32
    %18 = vector.broadcast %cst_10 : f32 to vector<8x8xf32>
    %19 = arith.maximumf %17, %18 : vector<8x8xf32>
    %cst_11 = arith.constant 3.000000e-01 : f32
    %20 = vector.broadcast %cst_11 : f32 to vector<1x8xf32>
    %21 = arith.subf %20, %13 : vector<1x8xf32>
    %22 = vector.broadcast %21 : vector<1x8xf32> to vector<8x8xf32>
    %23 = arith.addf %7, %22 : vector<8x8xf32>
    %cst_12 = arith.constant 0.000000e+00 : f32
    %24 = vector.broadcast %cst_12 : f32 to vector<8x8xf32>
    %25 = arith.maximumf %23, %24 : vector<8x8xf32>
    %26 = arith.addf %19, %25 : vector<8x8xf32>
    %c0_13 = arith.constant 0 : index
    %c0_14 = arith.constant 0 : index
    %27 = vector.load %arg8[%c0_13, %c0_14] : memref<8x8xf32, #tpu.memory_space<vmem>>, vector<8x8xf32>
    %28 = arith.mulf %26, %27 : vector<8x8xf32>
    %29 = vector.shape_cast %28 : vector<8x8xf32> to vector<1x8x8xf32>
    %cst_15 = arith.constant dense<0.000000e+00> : vector<1xf32>
    %30 = vector.multi_reduction <add>, %29, %cst_15 [1, 2] : vector<1x8x8xf32> to vector<1xf32>
    %31 = vector.shape_cast %30 : vector<1xf32> to vector<1x1x1xf32>
    %32 = vector.extract %31[0, 0, 0] : f32 from vector<1x1x1xf32>
    %c0_16 = arith.constant 0 : index
    %c0_17 = arith.constant 0 : index
    %33 = vector.load %arg7[%c0_16, %c0_17] : memref<1x1xf32, #tpu.memory_space<vmem>>, vector<1x1xf32>
    %34 = vector.broadcast %32 : f32 to vector<1x1xf32>
    %35 = arith.addf %33, %34 : vector<1x1xf32>
    %c0_18 = arith.constant 0 : index
    %c0_19 = arith.constant 0 : index
    %36 = vector.load %arg7[%c0_18, %c0_19] : memref<1x1xf32, #tpu.memory_space<vmem>>, vector<1x1xf32>
    tpu.vector_store %arg7[%c0_18, %c0_19], %35 {strides = array<i32>} : memref<1x1xf32, #tpu.memory_space<vmem>>, vector<1x1xf32>,
    return
  }
  func.func @transform_0(%arg0: i32, %arg1: memref<3xi32, #tpu.memory_space<smem>>, %arg2: memref<3xi32, #tpu.memory_space<smem>>) -> (i32, i32, i32) {
    %0 = arith.index_cast %arg0 : i32 to index
    %1 = memref.load %arg1[%0] : memref<3xi32, #tpu.memory_space<smem>>
    %c0_i32 = arith.constant 0 : i32
    %c0_i32_0 = arith.constant 0 : i32
    %c0_i32_1 = arith.constant 0 : i32
    return %1, %c0_i32, %c0_i32_0 : i32, i32, i32
  }
  func.func @transform_1(%arg0: i32, %arg1: memref<3xi32, #tpu.memory_space<smem>>, %arg2: memref<3xi32, #tpu.memory_space<smem>>) -> (i32, i32, i32) {
    %0 = arith.index_cast %arg0 : i32 to index
    %1 = memref.load %arg2[%0] : memref<3xi32, #tpu.memory_space<smem>>
    %c0_i32 = arith.constant 0 : i32
    %c0_i32_0 = arith.constant 0 : i32
    %c0_i32_1 = arith.constant 0 : i32
    return %1, %c0_i32, %c0_i32_0 : i32, i32, i32
  }
  func.func @transform_2(%arg0: i32, %arg1: memref<3xi32, #tpu.memory_space<smem>>, %arg2: memref<3xi32, #tpu.memory_space<smem>>) -> (i32, i32) {
    %c0_i32 = arith.constant 0 : i32
    %c0_i32_0 = arith.constant 0 : i32
    %c0_i32_1 = arith.constant 0 : i32
    return %c0_i32, %c0_i32_0 : i32, i32
  }
  func.func @transform_3(%arg0: i32, %arg1: memref<3xi32, #tpu.memory_space<smem>>, %arg2: memref<3xi32, #tpu.memory_space<smem>>) -> (i32, i32) {
    %c0_i32 = arith.constant 0 : i32
    %c0_i32_0 = arith.constant 0 : i32
    %c0_i32_1 = arith.constant 0 : i32
    return %c0_i32, %c0_i32_0 : i32, i32
  }
  func.func @transform_4(%arg0: i32, %arg1: memref<3xi32, #tpu.memory_space<smem>>, %arg2: memref<3xi32, #tpu.memory_space<smem>>) -> (i32, i32) {
    %c0_i32 = arith.constant 0 : i32
    %c0_i32_0 = arith.constant 0 : i32
    %c0_i32_1 = arith.constant 0 : i32
    return %c0_i32, %c0_i32_0 : i32, i32
  }
}

</mosaic_0001>

<llo_original>
// kernel: tpu_custom_call.1
$region0: #{tpu_custom_call.1}
  #allocation0 [shape = 'u32[]', space=smem, size = 0x4, offset = 0x4, fixed_abs, tag = 'smem constant byte address 0x4 - core index']
  #allocation1 [shape = 'u32[144,128]{1,0:T(1,128)}', space=vmem, size = 0x12000, scoped, tag = 'internal scratch']
  #allocation2 [shape = 'f32[8,8]{1,0:T(8,128)}', space=vmem, size = 0x1000, scoped, tag = 'scratch operand']
  #allocation3 [shape = 's32[1]{0}', space=sflag, size = 0x4, scoped, tag = 'scoped memory for tpu_custom_call.1']
  #allocation4 [shape = 'u8[512]{0}', space=smem, size = 0x200, scoped, tag = 'prefetched SMEM operand 0']
  #allocation5 [shape = 'u8[512]{0}', space=smem, size = 0x200, scoped, tag = 'prefetched SMEM operand 1']
  %s0 = inlined_call_operand.vmem [shape: s32[3], index: 0, kind: input, shape index: {}]
  %s1 = inlined_call_operand.vmem [shape: s32[3], index: 1, kind: input, shape index: {}]
  %s2 = inlined_call_operand.hbm [shape: f32[3,8,128], index: 2, kind: input, shape index: {}]
  %s3 = inlined_call_operand.hbm [shape: f32[3,8,128], index: 3, kind: input, shape index: {}]
  %s4 = inlined_call_operand.vmem [shape: f32[8,4], index: 4, kind: input, shape index: {}]
  %s5 = inlined_call_operand.vmem [shape: f32[4,8], index: 5, kind: input, shape index: {}]
  %s6 = inlined_call_operand.hbm [shape: f32[1,1], index: 6, kind: output, shape index: {}]
  %s7 = sld [smem:[#allocation0]]
  $region61: #{tpu_custom_call.1} parent=0
    _
  %s9 = ssub.s32 1, %s7
  %s10 = scalar_select 0, %s9, %s7
  %s11 = sshll.u32 %s0, 4
  %s12 = int_to_ptr.vmem [resolvable:$true] %s11
  %14 = dma.vmem_to_smem %s12, 16, [#allocation4], [#allocation3]
  %s15 = sshll.u32 %s1, 4
  %s16 = int_to_ptr.vmem [resolvable:$true] %s15
  %18 = dma.vmem_to_smem %s16, 16, [#allocation5], [#allocation3]
  %19 = dma.done [#allocation3], 32
  %20 = sfence
  $region1: #{tpu_custom_call.1} parent=0
    #allocation6 [shape = 'u8[8192]{0}', space=vmem, size = 0x2000, scoped, tag = 'input window, operand 2']
    #allocation7 [shape = 's32[2]{0}', space=sflag, size = 0x8, scoped, tag = 'scoped memory for tpu_custom_call.1']
    #allocation8 [shape = 's32[2]{0}', space=sflag, size = 0x8, scoped, tag = 'scoped memory for tpu_custom_call.1']
    #allocation9 [shape = 'u8[8192]{0}', space=vmem, size = 0x2000, scoped, tag = 'input window, operand 3']
    #allocation10 [shape = 's32[2]{0}', space=sflag, size = 0x8, scoped, tag = 'scoped memory for tpu_custom_call.1']
    #allocation11 [shape = 'u8[512]{0}', space=vmem, size = 0x400, scoped, tag = 'output window, operand 0, single buffered']
    %21 = vsyncpa [#allocation7], 0
    %s22 = scalar_lea.sflag [#allocation7], 1
    %23 = vsyncpa %s22, 0
    %24 = vsyncpa [#allocation10], 0
    %s25 = scalar_lea.sflag [#allocation10], 1
    %26 = vsyncpa %s25, 0
    %27 = vsyncpa [#allocation8], 0
    loop: start=0, step=1, limit=5
    $region2: #{tpu_custom_call.1} parent=1 // loop_pre_header
      _
    $region3: #{tpu_custom_call.1} parent=1 // loop_header
      %s29 = sphi 0, %s33
      %p30 = scmp.ge.s32.totalorder %s29, 5
      %s41 = sphi 0, %s43
      %s44 = sphi 0, %s41
      %s45 = sphi 0, %s44
      %s61 = sphi 0, %s45
      %s69 = sphi 0, %s71
      %s72 = sphi 0, %s69
      %s73 = sphi 0, %s72
      %s89 = sphi 0, %s73
      %s93 = sphi 0, %s93
      %s95 = sphi 0, %s93
      %s96 = sphi 0, %s95
      %s110 = sphi 0, %s96
      %s114 = sphi 0, %s114
      %s116 = sphi 0, %s114
      %s117 = sphi 0, %s116
      %s131 = sphi 0, %s117
      %s135 = sphi 0, %s135
      %s137 = sphi 0, %s135
      %s138 = sphi 0, %s137
      %s152 = sphi 0, %s138
    $region4: #{tpu_custom_call.1} parent=1 // loop_header_branch
      %32 = sbr.rel (%p30) target = $region8
    $region5: #{tpu_custom_call.1} parent=1 // loop_body
      %s34 = ssub.s32 %s29, 1
      %s35 = ssub.s32 %s29, 2
      %s36 = sadd.s32 %s29, 1
      %s37 = sld [smem:[#allocation4 + %s29]]
      %s38 = sld [smem:[#allocation4 + %s36]]
      %s39 = ssub.s32 %s37, %s38
      %p40 = scmp.eq.s32.totalorder %s39, 0
      %s42 = sadd.s32 %s41, 1
      %s43 = scalar_select %p40, %s41, %s42
      %p46 = pneg %p40
      %p47 = scmp.eq.s32.totalorder %s29, 2
      %p48 = por %p46, %p47
      %p49 = scmp.ne.s32.totalorder %s41, %s44
      %p50 = scmp.eq.s32.totalorder %s29, 0
      %p51 = por %p49, %p50
      %p52 = scmp.ne.s32.totalorder %s41, %s44
      %p53 = scmp.eq.s32.totalorder %s34, 2
      %p54 = por %p52, %p53
      %p55 = scmp.ne.s32.totalorder %s44, %s45
      %p56 = scmp.eq.s32.totalorder %s34, 0
      %p57 = por %p55, %p56
      %p58 = scmp.ne.s32.totalorder %s44, %s45
      %p59 = scmp.eq.s32.totalorder %s35, 2
      %p60 = por %p58, %p59
      %p62 = scmp.ne.s32.totalorder %s45, %s61
      %p63 = scmp.eq.s32.totalorder %s35, 0
      %p64 = por %p62, %p63
      %s65 = sld [smem:[#allocation5 + %s29]]
      %s66 = sld [smem:[#allocation5 + %s36]]
      %s67 = ssub.s32 %s65, %s66
      %p68 = scmp.eq.s32.totalorder %s67, 0
      %s70 = sadd.s32 %s69, 1
      %s71 = scalar_select %p68, %s69, %s70
      %p74 = pneg %p68
      %p75 = scmp.eq.s32.totalorder %s29, 2
      %p76 = por %p74, %p75
      %p77 = scmp.ne.s32.totalorder %s69, %s72
      %p78 = scmp.eq.s32.totalorder %s29, 0
      %p79 = por %p77, %p78
      %p80 = scmp.ne.s32.totalorder %s69, %s72
      %p81 = scmp.eq.s32.totalorder %s34, 2
      %p82 = por %p80, %p81
      %p83 = scmp.ne.s32.totalorder %s72, %s73
      %p84 = scmp.eq.s32.totalorder %s34, 0
      %p85 = por %p83, %p84
      %p86 = scmp.ne.s32.totalorder %s72, %s73
      %p87 = scmp.eq.s32.totalorder %s35, 2
      %p88 = por %p86, %p87
      %p90 = scmp.ne.s32.totalorder %s73, %s89
      %p91 = scmp.eq.s32.totalorder %s35, 0
      %p92 = por %p90, %p91
      %s94 = sadd.s32 %s93, 1
      %p97 = scmp.eq.s32.totalorder %s29, 2
      %p98 = scmp.ne.s32.totalorder %s93, %s95
      %p99 = scmp.eq.s32.totalorder %s29, 0
      %p100 = por %p98, %p99
      %p101 = scmp.ne.s32.totalorder %s93, %s95
      %p102 = scmp.eq.s32.totalorder %s34, 2
      %p103 = por %p101, %p102
      %p104 = scmp.ne.s32.totalorder %s95, %s96
      %p105 = scmp.eq.s32.totalorder %s34, 0
      %p106 = por %p104, %p105
      %p107 = scmp.ne.s32.totalorder %s95, %s96
      %p108 = scmp.eq.s32.totalorder %s35, 2
      %p109 = por %p107, %p108
      %p111 = scmp.ne.s32.totalorder %s96, %s110
      %p112 = scmp.eq.s32.totalorder %s35, 0
      %p113 = por %p111, %p112
      %s115 = sadd.s32 %s114, 1
      %p118 = scmp.eq.s32.totalorder %s29, 2
      %p119 = scmp.ne.s32.totalorder %s114, %s116
      %p120 = scmp.eq.s32.totalorder %s29, 0
      %p121 = por %p119, %p120
      %p122 = scmp.ne.s32.totalorder %s114, %s116
      %p123 = scmp.eq.s32.totalorder %s34, 2
      %p124 = por %p122, %p123
      %p125 = scmp.ne.s32.totalorder %s116, %s117
      %p126 = scmp.eq.s32.totalorder %s34, 0
      %p127 = por %p125, %p126
      %p128 = scmp.ne.s32.totalorder %s116, %s117
      %p129 = scmp.eq.s32.totalorder %s35, 2
      %p130 = por %p128, %p129
      %p132 = scmp.ne.s32.totalorder %s117, %s131
      %p133 = scmp.eq.s32.totalorder %s35, 0
      %p134 = por %p132, %p133
      %s136 = sadd.s32 %s135, 1
      %p139 = scmp.eq.s32.totalorder %s29, 2
      %p140 = scmp.ne.s32.totalorder %s135, %s137
      %p141 = scmp.eq.s32.totalorder %s29, 0
      %p142 = por %p140, %p141
      %p143 = scmp.ne.s32.totalorder %s135, %s137
      %p144 = scmp.eq.s32.totalorder %s34, 2
      %p145 = por %p143, %p144
      %p146 = scmp.ne.s32.totalorder %s137, %s138
      %p147 = scmp.eq.s32.totalorder %s34, 0
      %p148 = por %p146, %p147
      %p149 = scmp.ne.s32.totalorder %s137, %s138
      %p150 = scmp.eq.s32.totalorder %s35, 2
      %p151 = por %p149, %p150
      %p153 = scmp.ne.s32.totalorder %s138, %s152
      %p154 = scmp.eq.s32.totalorder %s35, 0
      %p155 = por %p153, %p154
      %p156 = scmp.le.s32.totalorder 1, %s29
      %p157 = scmp.lt.s32.totalorder %s29, 4
      %p158 = pnand %p156, %p157
      %p159 = pneg %p158
      // Predicated region
      $region9: #{tpu_custom_call.1} parent=5 // pred_check
        _
      $region10: #{tpu_custom_call.1} parent=5 // pred_check_branch
        %161 = sbr.rel (%p158) target = $region12
      $region11: #{tpu_custom_call.1} parent=5 // pred_region
        %s162 = ssub.s32 %s29, 1
        // Predicated region
        $region13: #{tpu_custom_call.1} parent=11 // pred_check
          %p163 = pneg %p106
        $region14: #{tpu_custom_call.1} parent=11 // pred_check_branch
          %165 = sbr.rel (%p163) target = $region16
        $region15: #{tpu_custom_call.1} parent=11 // pred_region
          _
        $region16: #{tpu_custom_call.1} parent=11 // pred_fallthru
          _
        // Predicated region
        $region17: #{tpu_custom_call.1} parent=11 // pred_check
          %p166 = pneg %p127
        $region18: #{tpu_custom_call.1} parent=11 // pred_check_branch
          %168 = sbr.rel (%p166) target = $region20
        $region19: #{tpu_custom_call.1} parent=11 // pred_region
          _
        $region20: #{tpu_custom_call.1} parent=11 // pred_fallthru
          _
      $region12: #{tpu_custom_call.1} parent=5 // pred_fallthru
        _
      %p169 = scmp.lt.s32.totalorder %s29, 3
      // Predicated region
      $region21: #{tpu_custom_call.1} parent=5 // pred_check
        %p170 = pneg %p169
      $region22: #{tpu_custom_call.1} parent=5 // pred_check_branch
        %172 = sbr.rel (%p170) target = $region24
      $region23: #{tpu_custom_call.1} parent=5 // pred_region
        // Predicated region
        $region25: #{tpu_custom_call.1} parent=23 // pred_check
          %p173 = pneg %p51
        $region26: #{tpu_custom_call.1} parent=23 // pred_check_branch
          %175 = sbr.rel (%p173) target = $region28
        $region27: #{tpu_custom_call.1} parent=23 // pred_region
          %s176 = sand.u32 %s41, 1
          %s177 = scalar_lea.sflag [#allocation7], %s176
          %s178 = sand.u32 %s41, 1
          %s179 = smul.addr %s178, 8
          %s180 = scalar_lea.vmem [#allocation6], %s179
          %s181 = sld [smem:[#allocation4 + %s29]]
          %s183 = ssub.s32 128, 128
          %184 = vsyncadd %s177, %s183
          %s185 = smul.addr %s181, 128
          %s186 = scalar_lea.hbm %s2, %s185
          %s188 = sshll.u32 %s180, 4
          %s189 = int_to_ptr.vmem [resolvable:$true] %s188
          %191 = dma.hbm_to_vmem [thread:$0]  %s186, 128, %s189, %s177
        $region28: #{tpu_custom_call.1} parent=23 // pred_fallthru
          _
        // Predicated region
        $region29: #{tpu_custom_call.1} parent=23 // pred_check
          %p192 = pneg %p79
        $region30: #{tpu_custom_call.1} parent=23 // pred_check_branch
          %194 = sbr.rel (%p192) target = $region32
        $region31: #{tpu_custom_call.1} parent=23 // pred_region
          %s195 = sand.u32 %s69, 1
          %s196 = scalar_lea.sflag [#allocation10], %s195
          %s197 = sand.u32 %s69, 1
          %s198 = smul.addr %s197, 8
          %s199 = scalar_lea.vmem [#allocation9], %s198
          %s200 = sld [smem:[#allocation5 + %s29]]
          %s202 = ssub.s32 128, 128
          %203 = vsyncadd %s196, %s202
          %s204 = smul.addr %s200, 128
          %s205 = scalar_lea.hbm %s3, %s204
          %s207 = sshll.u32 %s199, 4
          %s208 = int_to_ptr.vmem [resolvable:$true] %s207
          %210 = dma.hbm_to_vmem [thread:$0]  %s205, 128, %s208, %s196
        $region32: #{tpu_custom_call.1} parent=23 // pred_fallthru
          _
      $region24: #{tpu_custom_call.1} parent=5 // pred_fallthru
        _
      %p211 = scmp.le.s32.totalorder 1, %s29
      %p212 = scmp.lt.s32.totalorder %s29, 4
      %p213 = pnand %p211, %p212
      %p214 = pneg %p213
      // Predicated region
      $region33: #{tpu_custom_call.1} parent=5 // pred_check
        _
      $region34: #{tpu_custom_call.1} parent=5 // pred_check_branch
        %216 = sbr.rel (%p213) target = $region36
      $region35: #{tpu_custom_call.1} parent=5 // pred_region
        %s217 = ssub.s32 %s29, 1
        %s218 = sand.u32 %s44, 1
        %s219 = scalar_lea.sflag [#allocation7], %s218
        %s220 = sand.u32 %s44, 1
        %s221 = smul.addr %s220, 8
        %s222 = scalar_lea.vmem [#allocation6], %s221
        // Predicated region
        $region37: #{tpu_custom_call.1} parent=35 // pred_check
          %p223 = pneg %p57
        $region38: #{tpu_custom_call.1} parent=35 // pred_check_branch
          %225 = sbr.rel (%p223) target = $region40
        $region39: #{tpu_custom_call.1} parent=35 // pred_region
          %226 = dma.done %s219, 128
        $region40: #{tpu_custom_call.1} parent=35 // pred_fallthru
          _
        %s227 = sand.u32 %s72, 1
        %s228 = scalar_lea.sflag [#allocation10], %s227
        %s229 = sand.u32 %s72, 1
        %s230 = smul.addr %s229, 8
        %s231 = scalar_lea.vmem [#allocation9], %s230
        // Predicated region
        $region41: #{tpu_custom_call.1} parent=35 // pred_check
          %p232 = pneg %p85
        $region42: #{tpu_custom_call.1} parent=35 // pred_check_branch
          %234 = sbr.rel (%p232) target = $region44
        $region43: #{tpu_custom_call.1} parent=35 // pred_region
          %235 = dma.done %s228, 128
        $region44: #{tpu_custom_call.1} parent=35 // pred_fallthru
          _
        %s236 = sand.u32 %s44, 1
        %s237 = scalar_lea.sflag [#allocation7], %s236
        %s238 = sand.u32 %s44, 1
        %s239 = smul.addr %s238, 8
        %s240 = scalar_lea.vmem [#allocation6], %s239
        %p241 = pneg %p57
        %p242 = pneg %p54
        %s243 = sand.u32 %s72, 1
        %s244 = scalar_lea.sflag [#allocation10], %s243
        %s245 = sand.u32 %s72, 1
        %s246 = smul.addr %s245, 8
        %s247 = scalar_lea.vmem [#allocation9], %s246
        %p248 = pneg %p85
        %p249 = pneg %p82
        %p250 = pneg %p106
        %p251 = pneg %p103
        %p252 = pneg %p127
        %p253 = pneg %p124
        %p254 = pneg %p148
        %p255 = pneg %p145
        %s256 = sld [smem:[#allocation4 + %s34]]
        %s257 = sld [smem:[#allocation5 + %s34]]
        %p258 = scmp.eq.s32.totalorder %s34, 0
        // Predicated region
        $region45: #{tpu_custom_call.1} parent=35 // pred_check
          %p259 = pneg %p258
        $region46: #{tpu_custom_call.1} parent=35 // pred_check_branch
          %261 = sbr.rel (%p259) target = $region48
        $region47: #{tpu_custom_call.1} parent=35 // pred_region
          %vm262 = vcmask 0
          %263 = vst.msk [vmem:[#allocation11] sm:$0x1] %vm262, 0.0
          %v264 = vld [vmem:[%s4] sm:$0xff]
          %v265 = vld [vmem:[%s5] sm:$0x1]
          %267 = vset.pattern.permute.xlu0 0
          %268 = vperm.xlu0 %267, %v264
          %v269 = vpop.permute.xlu0 %268
          %v271 = vlaneseq
          %v272 = vshrl.u32 %v271, 7
          %v273 = vsub.s32 0, %v272
          %v274 = vrot.slane %v265, %v273
          %v275 = vsub.f32 %v269, %v274
          %v276 = vand.u32 2147483647, %v275
          %v277 = vadd.f32 %v276, 0.0
          %v278 = vld [vmem:[%s5 + $0x1] sm:$0x1]
          %279 = vset.pattern.permute.xlu0 1
          %280 = vperm.xlu0 %279, %v264
          %v281 = vpop.permute.xlu0 %280
          %v283 = vlaneseq
          %v284 = vshrl.u32 %v283, 7
          %v285 = vsub.s32 0, %v284
          %v286 = vrot.slane %v278, %v285
          %v287 = vsub.f32 %v281, %v286
          %v288 = vand.u32 2147483647, %v287
          %v289 = vadd.f32 %v277, %v288
          %v290 = vld [vmem:[%s5 + $0x2] sm:$0x1]
          %291 = vset.pattern.permute.xlu0 2
          %292 = vperm.xlu0 %291, %v264
          %v293 = vpop.permute.xlu0 %292
          %v295 = vlaneseq
          %v296 = vshrl.u32 %v295, 7
          %v297 = vsub.s32 0, %v296
          %v298 = vrot.slane %v290, %v297
          %v299 = vsub.f32 %v293, %v298
          %v300 = vand.u32 2147483647, %v299
          %v301 = vadd.f32 %v289, %v300
          %v302 = vld [vmem:[%s5 + $0x3] sm:$0x1]
          %303 = vset.pattern.permute.xlu0 3
          %304 = vperm.xlu0 %303, %v264
          %v305 = vpop.permute.xlu0 %304
          %v307 = vlaneseq
          %v308 = vshrl.u32 %v307, 7
          %v309 = vsub.s32 0, %v308
          %v310 = vrot.slane %v302, %v309
          %v311 = vsub.f32 %v305, %v310
          %v312 = vand.u32 2147483647, %v311
          %v313 = vadd.f32 %v301, %v312
          %v314 = vlaneseq
          %v315 = vshrl.u32 %v314, 7
          %v316 = vlaneseq
          %v317 = vand.u32 %v316, 127
          %vm318 = vcmp.ne.s32.totalorder %v315, %v317
          %v319 = vmul.f32 %v313, 0.004761905
          %v320 = vsel %vm318, %v319, 0.0
          %vm321 = vcmask 64512
          %322 = vst.msk [vmem:[#allocation2] sm:$0xff] %vm321, %v320
        $region48: #{tpu_custom_call.1} parent=35 // pred_fallthru
          _
        %v323 = vld [vmem:[%s222] sm:$0xff]
        %v324 = vld [vmem:[%s231] sm:$0xff]
        %325 = vmatprep.subr.mxu0 0.0
        %326 = vmatpush1.xpose.msra.mxu0 %v324
        %327 = vmatprep.subr.mxu0 0.0
        %328 = vmatpush1.xpose.msra.mxu0 0.0
        %329 = vmatprep.subr.mxu0 0.0
        %330 = vmatpush1.xpose.msra.mxu0 0.0
        %331 = vmatprep.subr.mxu0 0.0
        %332 = vmatpush1.xpose.msra.mxu0 0.0
        %333 = vmatprep.subr.mxu0 0.0
        %334 = vmatpush1.xpose.msra.mxu0 0.0
        %335 = vmatprep.subr.mxu0 0.0
        %336 = vmatpush1.xpose.msra.mxu0 0.0
        %337 = vmatprep.subr.mxu0 0.0
        %338 = vmatpush1.xpose.msra.mxu0 0.0
        %339 = vmatprep.subr.mxu0 0.0
        %340 = vmatpush1.xpose.msra.mxu0 0.0
        %341 = vmatprep.subr.mxu0 0.0
        %342 = vmatpush1.xpose.msra.mxu0 0.0
        %343 = vmatprep.subr.mxu0 0.0
        %344 = vmatpush1.xpose.msra.mxu0 0.0
        %345 = vmatprep.subr.mxu0 0.0
        %346 = vmatpush1.xpose.msra.mxu0 0.0
        %347 = vmatprep.subr.mxu0 0.0
        %348 = vmatpush1.xpose.msra.mxu0 0.0
        %349 = vmatprep.subr.mxu0 0.0
        %350 = vmatpush1.xpose.msra.mxu0 0.0
        %351 = vmatprep.subr.mxu0 0.0
        %352 = vmatpush1.xpose.msra.mxu0 0.0
        %353 = vmatprep.subr.mxu0 0.0
        %354 = vmatpush1.xpose.msra.mxu0 0.0
        %355 = vmatprep.subr.mxu0 0.0
        %356 = vmatpush1.xpose.msra.mxu0 0.0
        %357 = vmatprep.subr.mxu0 0.0
        %358 = vmatpush1.xpose.msra.mxu0 0.0
        %359 = vmatprep.subr.mxu0 0.0
        %360 = vmatpush1.xpose.msra.mxu0 0.0
        %361 = vmatprep.subr.mxu0 0.0
        %362 = vmatpush1.xpose.msra.mxu0 0.0
        %363 = vmatprep.subr.mxu0 0.0
        %364 = vmatpush1.xpose.msra.mxu0 0.0
        %365 = vmatprep.subr.mxu0 0.0
        %366 = vmatpush1.xpose.msra.mxu0 0.0
        %367 = vmatprep.subr.mxu0 0.0
        %368 = vmatpush1.xpose.msra.mxu0 0.0
        %369 = vmatprep.subr.mxu0 0.0
        %370 = vmatpush1.xpose.msra.mxu0 0.0
        %371 = vmatprep.subr.mxu0 0.0
        %372 = vmatpush1.xpose.msra.mxu0 0.0
        %373 = vmatprep.subr.mxu0 0.0
        %374 = vmatpush1.xpose.msra.mxu0 0.0
        %375 = vmatprep.subr.mxu0 0.0
        %376 = vmatpush1.xpose.msra.mxu0 0.0
        %377 = vmatprep.subr.mxu0 0.0
        %378 = vmatpush1.xpose.msra.mxu0 0.0
        %379 = vmatprep.subr.mxu0 0.0
        %380 = vmatpush1.xpose.msra.mxu0 0.0
        %381 = vmatprep.subr.mxu0 0.0
        %382 = vmatpush1.xpose.msra.mxu0 0.0
        %383 = vmatprep.subr.mxu0 0.0
        %384 = vmatpush1.xpose.msra.mxu0 0.0
        %385 = vmatprep.subr.mxu0 0.0
        %386 = vmatpush1.xpose.msra.mxu0 0.0
        %387 = vmatprep.subr.mxu0 0.0
        %388 = vmatpush1.xpose.msra.mxu0 0.0
        %389 = vmatprep.mubr.f32.mxu0 0.0
        %390 = vmatmul.mubr.f32.gmra.mrb[0].mxu0 %v323
        %v391 = vpop.f32.mrb[0].mxu0
        %v392 = vadd.f32 0.0, %v391
        %v393 = vpop.f32.mrb[0].mxu0
        %394 = vdwg.mxu0
        %v395 = vmul.f32 %v323, %v324
        %396 = vadd.xlane.f32.xlu0 %v395
        %v397 = vpop.xlane.xlu0 %396
        %398 = vmatprep.subr.mxu0 0.0
        %399 = vmatpush1.xpose.msra.mxu0 %v395
        %400 = vmatprep.subr.mxu0 0.0
        %401 = vmatpush1.xpose.msra.mxu0 0.0
        %402 = vmatprep.subr.mxu0 0.0
        %403 = vmatpush1.xpose.msra.mxu0 0.0
        %404 = vmatprep.subr.mxu0 0.0
        %405 = vmatpush1.xpose.msra.mxu0 0.0
        %406 = vmatprep.subr.mxu0 0.0
        %407 = vmatpush1.xpose.msra.mxu0 0.0
        %408 = vmatprep.subr.mxu0 0.0
        %409 = vmatpush1.xpose.msra.mxu0 0.0
        %410 = vmatprep.subr.mxu0 0.0
        %411 = vmatpush1.xpose.msra.mxu0 0.0
        %412 = vmatprep.subr.mxu0 0.0
        %413 = vmatpush1.xpose.msra.mxu0 0.0
        %414 = vmatprep.subr.mxu0 0.0
        %415 = vmatpush1.xpose.msra.mxu0 0.0
        %416 = vmatprep.subr.mxu0 0.0
        %417 = vmatpush1.xpose.msra.mxu0 0.0
        %418 = vmatprep.subr.mxu0 0.0
        %419 = vmatpush1.xpose.msra.mxu0 0.0
        %420 = vmatprep.subr.mxu0 0.0
        %421 = vmatpush1.xpose.msra.mxu0 0.0
        %422 = vmatprep.subr.mxu0 0.0
        %423 = vmatpush1.xpose.msra.mxu0 0.0
        %424 = vmatprep.subr.mxu0 0.0
        %425 = vmatpush1.xpose.msra.mxu0 0.0
        %426 = vmatprep.subr.mxu0 0.0
        %427 = vmatpush1.xpose.msra.mxu0 0.0
        %428 = vmatprep.subr.mxu0 0.0
        %429 = vmatpush1.xpose.msra.mxu0 0.0
        %430 = vmatprep.subr.mxu0 0.0
        %431 = vmatpush1.xpose.msra.mxu0 0.0
        %432 = vmatprep.subr.mxu0 0.0
        %433 = vmatpush1.xpose.msra.mxu0 0.0
        %434 = vmatprep.subr.mxu0 0.0
        %435 = vmatpush1.xpose.msra.mxu0 0.0
        %436 = vmatprep.subr.mxu0 0.0
        %437 = vmatpush1.xpose.msra.mxu0 0.0
        %438 = vmatprep.subr.mxu0 0.0
        %439 = vmatpush1.xpose.msra.mxu0 0.0
        %440 = vmatprep.subr.mxu0 0.0
        %441 = vmatpush1.xpose.msra.mxu0 0.0
        %442 = vmatprep.subr.mxu0 0.0
        %443 = vmatpush1.xpose.msra.mxu0 0.0
        %444 = vmatprep.subr.mxu0 0.0
        %445 = vmatpush1.xpose.msra.mxu0 0.0
        %446 = vmatprep.subr.mxu0 0.0
        %447 = vmatpush1.xpose.msra.mxu0 0.0
        %448 = vmatprep.subr.mxu0 0.0
        %449 = vmatpush1.xpose.msra.mxu0 0.0
        %450 = vmatprep.subr.mxu0 0.0
        %451 = vmatpush1.xpose.msra.mxu0 0.0
        %452 = vmatprep.subr.mxu0 0.0
        %453 = vmatpush1.xpose.msra.mxu0 0.0
        %454 = vmatprep.subr.mxu0 0.0
        %455 = vmatpush1.xpose.msra.mxu0 0.0
        %456 = vmatprep.subr.mxu0 0.0
        %457 = vmatpush1.xpose.msra.mxu0 0.0
        %458 = vmatprep.subr.mxu0 0.0
        %459 = vmatpush1.xpose.msra.mxu0 0.0
        %460 = vmatprep.subr.mxu0 0.0
        %461 = vmatpush1.xpose.msra.mxu0 0.0
        %462 = vmatprep.mubr.f32.mxu0 0.0
        %463 = vmatmul.mubr.f32.gmra.mrb[0].mxu0 1.0
        %v464 = vpop.f32.mrb[0].mxu0
        %v465 = vadd.f32 0.0, %v464
        %v466 = vpop.f32.mrb[0].mxu0
        %467 = vdwg.mxu0
        %v468 = vsub.f32 0.3, %v397
        %v469 = vadd.f32 %v392, %v468
        %v470 = vmax.f32 %v469, 0.0
        %v471 = vsub.f32 0.3, %v465
        %v472 = vlaneseq
        %v473 = vshrl.u32 %v472, 7
        %v474 = vsub.s32 0, %v473
        %v475 = vrot.slane %v471, %v474
        %v476 = vadd.f32 %v392, %v475
        %v477 = vmax.f32 %v476, 0.0
        %v478 = vadd.f32 %v470, %v477
        %v479 = vld [vmem:[#allocation2] sm:$0xff]
        %v480 = vmul.f32 %v478, %v479
        %vm481 = vcmask 64512
        %v482 = vsel %vm481, %v480, 0.0
        %483 = vadd.xlane.f32.xlu0 %v482
        %v484 = vpop.xlane.xlu0 %483
        %v485 = vrot.slane %v484, 4
        %v486 = vadd.f32 %v484, %v485
        %v487 = vrot.slane %v486, 2
        %v488 = vadd.f32 %v486, %v487
        %v489 = vrot.slane %v488, 1
        %v490 = vadd.f32 %v488, %v489
        %s491 = vtos %v490
        %v492 = vld [vmem:[#allocation11] sm:$0x1]
        %v493 = vstv %s491
        %v494 = vadd.f32 %v492, %v493
        %vm495 = vcmask 0
        %496 = vst.msk [vmem:[#allocation11] sm:$0x1] %vm495, %v494
        // Predicated region
        $region49: #{tpu_custom_call.1} parent=35 // pred_check
          %p497 = pneg %p145
        $region50: #{tpu_custom_call.1} parent=35 // pred_check_branch
          %499 = sbr.rel (%p497) target = $region52
        $region51: #{tpu_custom_call.1} parent=35 // pred_region
          %s501 = ssub.s32 16, 16
          %502 = vsyncadd [#allocation8], %s501
          %s504 = sshll.u32 [#allocation11], 4
          %s505 = int_to_ptr.vmem [resolvable:$true] %s504
          %507 = dma.vmem_to_hbm [thread:$0]  %s505, 16, %s6, [#allocation8]
        $region52: #{tpu_custom_call.1} parent=35 // pred_fallthru
          _
        // Predicated region
        $region53: #{tpu_custom_call.1} parent=35 // pred_check
          %p508 = pneg %p145
        $region54: #{tpu_custom_call.1} parent=35 // pred_check_branch
          %510 = sbr.rel (%p508) target = $region56
        $region55: #{tpu_custom_call.1} parent=35 // pred_region
          %511 = dma.done [#allocation8], 16
        $region56: #{tpu_custom_call.1} parent=35 // pred_fallthru
          _
      $region36: #{tpu_custom_call.1} parent=5 // pred_fallthru
        _
      %p512 = scmp.le.s32.totalorder 2, %s29
      // Predicated region
      $region57: #{tpu_custom_call.1} parent=5 // pred_check
        %p513 = pneg %p512
      $region58: #{tpu_custom_call.1} parent=5 // pred_check_branch
        %515 = sbr.rel (%p513) target = $region60
      $region59: #{tpu_custom_call.1} parent=5 // pred_region
        %s516 = ssub.s32 %s29, 2
      $region60: #{tpu_custom_call.1} parent=5 // pred_fallthru
        _
    $region6: #{tpu_custom_call.1} parent=1 // loop_footer
      %s33 = sadd.s32 1, %s29
    $region7: #{tpu_custom_call.1} parent=1 // loop_footer_branch
      %28 = sbr.rel target = $region3
    $region8: #{tpu_custom_call.1} parent=1 // loop_exit
      _
    %517 = vsyncpa [#allocation7], 1
    %s518 = scalar_lea.sflag [#allocation7], 1
    %519 = vsyncpa %s518, 1
    %520 = vsyncpa [#allocation10], 1
    %s521 = scalar_lea.sflag [#allocation10], 1
    %522 = vsyncpa %s521, 1
    %523 = vsyncpa [#allocation8], 1
    %s524 = scalar_lea.sflag [#allocation8], 1
    %525 = vsyncpa %s524, 1

</llo_original>
